<compile_context>
chip_gen: v7x
topology: tpu7x:2x2x1
jax: 0.10.0
libtpu: 0.0.40
codegen_flags: <defaults>
</compile_context>

<pallas_src>
import functools
import math

import jax
import jax.numpy as jnp
from jax.experimental import pallas as pl
from jax.experimental.pallas import tpu as pltpu


# ----------------------------------------------------------------------------
# Generation-aware hardware configuration
# ----------------------------------------------------------------------------

def _hw_config():
    vmem_bytes = 64 * 1024 * 1024            # conservative fallback (v7x-sized)
    try:
        info = pltpu.get_tpu_info()
        vmem_bytes = int(getattr(info, "vmem_capacity_bytes", vmem_bytes))
    except Exception:
        pass
    wide_mxu = True                          # v6e / v7x: 256-wide MXU
    try:
        kind = jax.devices()[0].device_kind.lower()
        if any(t in kind for t in ("v2", "v3", "v4", "v5")):
            wide_mxu = False                 # 128x128 MXU parts
    except Exception:
        pass
    big_vmem = vmem_bytes >= 100 * 1024 * 1024
    return {
        "vmem_limit_bytes": max(32 * 1024 * 1024,
                                min(int(0.55 * vmem_bytes),
                                    96 * 1024 * 1024)),
        "wide_mxu": wide_mxu,
        # bf16 operands -> larger tiles fit comfortably on 128 MiB parts.
        "tm_cap": 512 if big_vmem else 256,
        "tn_cap": 1024 if big_vmem else 512,
        "tk_cap": 512,
        "tq_cap": 256,
    }


_CFG = _hw_config()
_SUBLANE_STEPS = (256, 128, 8)     # MXU-aligned first, 8-aligned fallback
_LANE_STEPS = (256, 128)           # lane dims must stay 128-multiples


def _pick_tile(dim, cap, steps):
    """Largest multiple of a preferred step dividing `dim` and <= cap.
    Tries steps in order (256-multiples first); falls back to full dim."""
    if dim <= cap:
        return dim
    for step in steps:
        t = (cap // step) * step
        while t >= step:
            if dim % t == 0:
                return t
            t -= step
    return dim   # fallback: full (un-tiled) dim


def _heads_per_block(heads, dh, wide_mxu):
    """Smallest head count per attention grid step giving a 128-multiple lane
    block, widened towards the MXU width (256 on v6e/v7x)."""
    target = 256 if wide_mxu else 128
    best = heads
    for hpb in range(1, heads + 1):
        if heads % hpb:
            continue
        if (hpb * dh) % 128 == 0:
            best = hpb
            if hpb * dh >= target:
                break
    return best


# ----------------------------------------------------------------------------
# Kernels
# ----------------------------------------------------------------------------

def _linear_kernel(x_ref, w_ref, b_ref, o_ref, acc_ref, *, activation):
    """Tiled GEMM with K-axis accumulation. Optional fused ReLU epilogue."""
    k = pl.program_id(2)

    @pl.when(k == 0)
    def _():
        acc_ref[...] = jnp.zeros_like(acc_ref)

    # Operands are already bf16 in VMEM -> straight into the MXU, f32 acc.
    acc_ref[...] += jnp.dot(x_ref[...], w_ref[...],
                            preferred_element_type=jnp.float32)

    @pl.when(k == pl.num_programs(2) - 1)
    def _():
        y = acc_ref[...] + b_ref[...].astype(jnp.float32)
        if activation == "relu":
            y = jnp.maximum(y, 0.0)
        o_ref[...] = y.astype(o_ref.dtype)


def _linear_res_ln_kernel(x_ref, w_ref, b_ref, res_ref, g_ref, beta_ref,
                          o_ref, acc_ref, *, eps):
    """Tiled GEMM (full-N) with fused residual-add + LayerNorm epilogue."""
    k = pl.program_id(1)

    @pl.when(k == 0)
    def _():
        acc_ref[...] = jnp.zeros_like(acc_ref)

    acc_ref[...] += jnp.dot(x_ref[...], w_ref[...],
                            preferred_element_type=jnp.float32)

    @pl.when(k == pl.num_programs(1) - 1)
    def _():
        y = (acc_ref[...] + b_ref[...].astype(jnp.float32)
             + res_ref[...].astype(jnp.float32))
        mu = jnp.mean(y, axis=-1, keepdims=True)
        var = jnp.mean((y - mu) ** 2, axis=-1, keepdims=True)
        yn = (y - mu) * jax.lax.rsqrt(var + eps)
        o_ref[...] = (yn * g_ref[...].astype(jnp.float32)
                      + beta_ref[...].astype(jnp.float32)).astype(o_ref.dtype)


def _attn_block(q, k, v, mask, scale, out_dtype):
    # q @ k^T without materializing the transpose: contract on Dh of both.
    s = jax.lax.dot_general(
        q, k, dimension_numbers=(((1,), (1,)), ((), ())),
        preferred_element_type=jnp.float32) * scale
    if mask is not None:
        s = s + mask                          # bf16 mask promotes to f32
    s = s - jnp.max(s, axis=-1, keepdims=True)
    p = jnp.exp(s)
    inv = pl.reciprocal(jnp.sum(p, axis=-1, keepdims=True), approx=True)
    ctx = jnp.dot(p.astype(v.dtype), v, preferred_element_type=jnp.float32)
    return (ctx * inv).astype(out_dtype)


def _attn_kernel(q_ref, k_ref, v_ref, o_ref, *, scale, hpb, dh):
    for h in range(hpb):                      # static unroll over packed heads
        sl = slice(h * dh, (h + 1) * dh)
        o_ref[0, :, sl] = _attn_block(q_ref[0, :, sl], k_ref[0, :, sl],
                                      v_ref[0, :, sl], None, scale,
                                      o_ref.dtype)


def _attn_mask_kernel(q_ref, k_ref, v_ref, m_ref, o_ref, *, scale, hpb, dh):
    m = m_ref[...]
    for h in range(hpb):
        sl = slice(h * dh, (h + 1) * dh)
        o_ref[0, :, sl] = _attn_block(q_ref[0, :, sl], k_ref[0, :, sl],
                                      v_ref[0, :, sl], m, scale, o_ref.dtype)


# ----------------------------------------------------------------------------
# pallas_call wrappers
# ----------------------------------------------------------------------------

def tiled_linear(x, w, b, activation=None, out_dtype=None,
                 tm_cap=None, tn_cap=None, tk_cap=None):
    M, K = x.shape
    N = w.shape[1]
    tm = _pick_tile(M, tm_cap or _CFG["tm_cap"], _SUBLANE_STEPS)
    tn = _pick_tile(N, tn_cap or _CFG["tn_cap"], _LANE_STEPS)
    tk = _pick_tile(K, tk_cap or _CFG["tk_cap"], _LANE_STEPS)
    grid = (M // tm, N // tn, K // tk)
    out_dtype = jnp.dtype(out_dtype) if out_dtype is not None else x.dtype
    isz = x.dtype.itemsize
    return pl.pallas_call(
        functools.partial(_linear_kernel, activation=activation),
        grid=grid,
        in_specs=[
            pl.BlockSpec((tm, tk), lambda i, j, k: (i, k)),
            pl.BlockSpec((tk, tn), lambda i, j, k: (k, j)),
            pl.BlockSpec((1, tn), lambda i, j, k: (0, j)),
        ],
        out_specs=pl.BlockSpec((tm, tn), lambda i, j, k: (i, j)),
        out_shape=jax.ShapeDtypeStruct((M, N), out_dtype),
        scratch_shapes=[pltpu.VMEM((tm, tn), jnp.float32)],
        compiler_params=pltpu.CompilerParams(
            dimension_semantics=("parallel", "parallel", "arbitrary"),
            vmem_limit_bytes=_CFG["vmem_limit_bytes"]),
        cost_estimate=pl.CostEstimate(
            flops=2 * M * N * K, transcendentals=0,
            bytes_accessed=isz * (M * K + K * N + N)
            + out_dtype.itemsize * M * N),
    )(x, w, b.reshape(1, N))


def tiled_linear_res_ln(x, w, b, res, gamma, beta, eps=1e-5,
                        tm_cap=None, tk_cap=None):
    """out = LayerNorm(x @ w + b + res), with N (= embed dim) un-tiled."""
    M, K = x.shape
    N = w.shape[1]
    tm = _pick_tile(M, tm_cap or _CFG["tm_cap"], _SUBLANE_STEPS)
    tk = _pick_tile(K, tk_cap or _CFG["tk_cap"], _LANE_STEPS)
    grid = (M // tm, K // tk)
    isz = x.dtype.itemsize
    return pl.pallas_call(
        functools.partial(_linear_res_ln_kernel, eps=eps),
        grid=grid,
        in_specs=[
            pl.BlockSpec((tm, tk), lambda i, k: (i, k)),
            pl.BlockSpec((tk, N), lambda i, k: (k, 0)),
            pl.BlockSpec((1, N), lambda i, k: (0, 0)),
            pl.BlockSpec((tm, N), lambda i, k: (i, 0)),
            pl.BlockSpec((1, N), lambda i, k: (0, 0)),
            pl.BlockSpec((1, N), lambda i, k: (0, 0)),
        ],
        out_specs=pl.BlockSpec((tm, N), lambda i, k: (i, 0)),
        out_shape=jax.ShapeDtypeStruct((M, N), x.dtype),
        scratch_shapes=[pltpu.VMEM((tm, N), jnp.float32)],
        compiler_params=pltpu.CompilerParams(
            dimension_semantics=("parallel", "arbitrary"),
            vmem_limit_bytes=_CFG["vmem_limit_bytes"]),
        cost_estimate=pl.CostEstimate(
            flops=2 * M * N * K, transcendentals=0,
            bytes_accessed=isz * (M * K + K * N + 3 * M * N + 3 * N)),
    )(x, w, b.reshape(1, N), res, gamma.reshape(1, N), beta.reshape(1, N))


def attention_context(q_arr, q_head_off, kv_arr, k_head_off, v_head_off,
                      mask, heads, dh):
    """q_arr: (B, Sq, *) slab with per-head Q blocks starting at head offset
    q_head_off; kv_arr: (B, Sk, *) slab with K heads at k_head_off and V at
    v_head_off (all offsets in units of heads).  Returns a lane-dense context
    slab (B, Sq, heads*dh)."""
    B, sq = q_arr.shape[0], q_arr.shape[1]
    sk = kv_arr.shape[1]
    e = heads * dh
    scale = 1.0 / math.sqrt(dh)

    # Pack heads into 256-lane blocks on wide-MXU parts (2 heads/step at
    # dh=128); per-head split is purely BlockSpec lane indexing, no transposes.
    hpb = _heads_per_block(heads, dh, _CFG["wide_mxu"])
    gw = hpb * dh
    n_groups = heads // hpb
    q_g, k_g, v_g = q_head_off // hpb, k_head_off // hpb, v_head_off // hpb

    # Sq tiling bounds the resident (tq, Sk) score/prob block.
    tq = _pick_tile(sq, _CFG["tq_cap"], _SUBLANE_STEPS)
    grid = (B, n_groups, sq // tq)

    in_specs = [
        pl.BlockSpec((1, tq, gw), lambda b, g, qi: (b, qi, q_g + g)),
        pl.BlockSpec((1, sk, gw), lambda b, g, qi: (b, 0, k_g + g)),
        pl.BlockSpec((1, sk, gw), lambda b, g, qi: (b, 0, v_g + g)),
    ]
    inputs = [q_arr, kv_arr, kv_arr]
    isz = q_arr.dtype.itemsize
    bytes_accessed = isz * B * (2 * sq * e + 2 * sk * e)
    if mask is not None:
        in_specs.append(pl.BlockSpec((tq, sk), lambda b, g, qi: (qi, 0)))
        inputs.append(mask)
        bytes_accessed += mask.dtype.itemsize * sq * sk
        kernel = functools.partial(_attn_mask_kernel, scale=scale,
                                   hpb=hpb, dh=dh)
    else:
        kernel = functools.partial(_attn_kernel, scale=scale, hpb=hpb, dh=dh)

    return pl.pallas_call(
        kernel,
        grid=grid,
        in_specs=in_specs,
        out_specs=pl.BlockSpec((1, tq, gw), lambda b, g, qi: (b, qi, g)),
        out_shape=jax.ShapeDtypeStruct((B, sq, e), q_arr.dtype),
        compiler_params=pltpu.CompilerParams(
            dimension_semantics=("parallel", "parallel", "parallel"),
            vmem_limit_bytes=_CFG["vmem_limit_bytes"]),
        cost_estimate=pl.CostEstimate(
            flops=4 * B * heads * sq * sk * dh,
            transcendentals=B * heads * sq * sk,
            bytes_accessed=bytes_accessed),
    )(*inputs)


# ----------------------------------------------------------------------------
# Parameters & forward pass
# ----------------------------------------------------------------------------

def _init_layer(key, E, F, dtype):
    ks = jax.random.split(key, 10)
    s = 0.02

    def w(k, shape):
        return (s * jax.random.normal(k, shape, jnp.float32)).astype(dtype)

    def zeros(n):
        return jnp.zeros((n,), dtype)

    def ones(n):
        return jnp.ones((n,), dtype)

    return {
        "sa_wqkv": w(ks[0], (E, 3 * E)), "sa_bqkv": zeros(3 * E),
        "sa_wo": w(ks[1], (E, E)), "sa_bo": zeros(E),
        "ce_wq": w(ks[2], (E, E)), "ce_bq": zeros(E),
        "ce_wkv": w(ks[3], (E, 2 * E)), "ce_bkv": zeros(2 * E),
        "ce_wo": w(ks[4], (E, E)), "ce_bo": zeros(E),
        "ae_wq": w(ks[5], (E, E)), "ae_bq": zeros(E),
        "ae_wkv": w(ks[6], (E, 2 * E)), "ae_bkv": zeros(2 * E),
        "ae_wo": w(ks[7], (E, E)), "ae_bo": zeros(E),
        "w1": w(ks[8], (E, F)), "b1": zeros(F),
        "w2": w(ks[9], (F, E)), "b2": zeros(E),
        "ln1_g": ones(E), "ln1_b": zeros(E),
        "ln2_g": ones(E), "ln2_b": zeros(E),
        "ln3_g": ones(E), "ln3_b": zeros(E),
        "ln4_g": ones(E), "ln4_b": zeros(E),
    }


def init_decoder_params(key, *, embed_size, vocab_size, num_layers, heads,
                        dim_feedforward, dtype=jnp.bfloat16):
    ks = jax.random.split(key, num_layers + 2)
    s = 0.02
    return {
        "heads": heads,
        "embedding": (s * jax.random.normal(
            ks[0], (vocab_size, embed_size), jnp.float32)).astype(dtype),
        "layers": [_init_layer(ks[i + 1], embed_size, dim_feedforward, dtype)
                   for i in range(num_layers)],
        "out_w": (s * jax.random.normal(
            ks[-1], (embed_size, vocab_size), jnp.float32)).astype(dtype),
        "out_b": jnp.zeros((vocab_size,), dtype),
    }


def decoder_layer(x, ce, ae, attn_mask, p, heads):
    B, S, E = x.shape
    dh = E // heads
    x2 = x.reshape(-1, E)                                    # (B*S, E)

    # --- masked self-attention (fused QKV, per-head split via BlockSpec) ---
    qkv = tiled_linear(x2, p["sa_wqkv"], p["sa_bqkv"]).reshape(B, S, 3 * E)
    ctx = attention_context(qkv, 0, qkv, heads, 2 * heads, attn_mask,
                            heads, dh)
    x2 = tiled_linear_res_ln(ctx.reshape(-1, E), p["sa_wo"], p["sa_bo"],
                             x2, p["ln1_g"], p["ln1_b"])

    # --- cross-attention over ce_outputs (no mask) ---
    q = tiled_linear(x2, p["ce_wq"], p["ce_bq"]).reshape(B, S, E)
    kv = tiled_linear(ce.reshape(-1, E), p["ce_wkv"],
                      p["ce_bkv"]).reshape(B, -1, 2 * E)
    ctx = attention_context(q, 0, kv, 0, heads, None, heads, dh)
    x2 = tiled_linear_res_ln(ctx.reshape(-1, E), p["ce_wo"], p["ce_bo"],
                             x2, p["ln2_g"], p["ln2_b"])

    # --- cross-attention over ae_outputs (no mask) ---
    q = tiled_linear(x2, p["ae_wq"], p["ae_bq"]).reshape(B, S, E)
    kv = tiled_linear(ae.reshape(-1, E), p["ae_wkv"],
                      p["ae_bkv"]).reshape(B, -1, 2 * E)
    ctx = attention_context(q, 0, kv, 0, heads, None, heads, dh)
    x2 = tiled_linear_res_ln(ctx.reshape(-1, E), p["ae_wo"], p["ae_bo"],
                             x2, p["ln3_g"], p["ln3_b"])

    # --- feed-forward: linear+ReLU, then linear fused with residual+LN ---
    h = tiled_linear(x2, p["w1"], p["b1"], activation="relu")
    x2 = tiled_linear_res_ln(h, p["w2"], p["b2"], x2, p["ln4_g"], p["ln4_b"])
    return x2.reshape(B, S, E)


def decoder_forward(params, input_ids, ce_outputs, ae_outputs, attention_mask):
    """input_ids: (B, S) int32; ce/ae_outputs: (B, S_enc, E);
    attention_mask: (S, S) additive float mask (applied to self-attention)."""
    heads = params["heads"]
    cdt = params["embedding"].dtype
    x = jnp.take(params["embedding"], input_ids, axis=0)     # (B, S, E)  glue
    ce = ce_outputs.astype(cdt)
    ae = ae_outputs.astype(cdt)
    mask = attention_mask.astype(cdt) if attention_mask is not None else None
    B, S, E = x.shape
    for lp in params["layers"]:
        x = decoder_layer(x, ce, ae, mask, lp, heads)
    V = params["out_w"].shape[1]
    # Final vocab projection; keep logits in f32 for downstream softmax/loss.
    preds = tiled_linear(x.reshape(-1, E), params["out_w"], params["out_b"],
                         out_dtype=jnp.float32)
    return preds.reshape(B, S, V)


# ----------------------------------------------------------------------------

if __name__ == "__main__":
    # Small shapes chosen so Dh = EMBED // HEADS = 128 (lane-aligned per-head
    # blocking, same as production E=768/heads=6).
    EMBED, VOCAB, LAYERS, HEADS, FFN_DIM = 256, 512, 2, 2, 512
    B, S, S_ENC = 2, 8, 8

    key = jax.random.PRNGKey(0)
    k_p, k_ids, k_ce, k_ae = jax.random.split(key, 4)

    params = init_decoder_params(
        k_p, embed_size=EMBED, vocab_size=VOCAB, num_layers=LAYERS,
        heads=HEADS, dim_feedforward=FFN_DIM)

    input_ids = jax.random.randint(k_ids, (B, S), 0, VOCAB, dtype=jnp.int32)
    ce_outputs = jax.random.normal(k_ce, (B, S_ENC, EMBED), jnp.float32)
    ae_outputs = jax.random.normal(k_ae, (B, S_ENC, EMBED), jnp.float32)
    # causal additive mask (S, S): 0 where allowed, -1e9 where masked
    causal = jnp.tril(jnp.ones((S, S), jnp.float32))
    attention_mask = jnp.where(causal > 0, 0.0, -1e9).astype(jnp.float32)

    out = decoder_forward(params, input_ids, ce_outputs, ae_outputs,
                          attention_mask)
    jax.block_until_ready(out)
    assert out.shape == (B, S, VOCAB)
    assert bool(jnp.all(jnp.isfinite(out)))
    print("KERNEL_OK")
</pallas_src>

<mosaic_0001>
module attributes {stable_mosaic.version = 11 : i64} {
  func.func @_linear_kernel(%arg0: i32, %arg1: i32, %arg2: i32, %arg3: memref<16x256xbf16, #tpu.memory_space<vmem>>, %arg4: memref<256x256xbf16, #tpu.memory_space<vmem>>, %arg5: memref<1x256xbf16, #tpu.memory_space<vmem>>, %arg6: memref<16x256xbf16, #tpu.memory_space<vmem>>, %arg7: memref<16x256xf32, #tpu.memory_space<vmem>>) attributes {dimension_semantics = [#tpu.dimension_semantics<parallel>, #tpu.dimension_semantics<parallel>, #tpu.dimension_semantics<arbitrary>], iteration_bounds = array<i64: 1, 3, 1>, scalar_prefetch = 0 : i64, scratch_operands = 1 : i64, tpu.core_type = #tpu.core_type<tc>, window_params = [{transform_indices = @transform_0, window_bounds = array<i64: 16, 256>}, {transform_indices = @transform_1, window_bounds = array<i64: 256, 256>}, {transform_indices = @transform_2, window_bounds = array<i64: 1, 256>}, {transform_indices = @transform_3, window_bounds = array<i64: 16, 256>}]} {
    %c0_i32 = arith.constant 0 : i32
    %0 = arith.cmpi eq, %arg2, %c0_i32 : i32
    %1 = arith.extui %0 : i1 to i32
    %c0_i32_0 = arith.constant 0 : i32
    %2 = arith.cmpi ne, %1, %c0_i32_0 : i32
    scf.if %2 {
      %cst_10 = arith.constant 0.000000e+00 : f32
      %12 = vector.broadcast %cst_10 : f32 to vector<16x256xf32>
      %c0_11 = arith.constant 0 : index
      %c0_12 = arith.constant 0 : index
      %13 = vector.load %arg7[%c0_11, %c0_12] : memref<16x256xf32, #tpu.memory_space<vmem>>, vector<16x256xf32>
      tpu.vector_store %arg7[%c0_11, %c0_12], %12 {strides = array<i32>} : memref<16x256xf32, #tpu.memory_space<vmem>>, vector<16x256xf32>,
    } else {
    }
    %c0 = arith.constant 0 : index
    %c0_1 = arith.constant 0 : index
    %3 = vector.load %arg7[%c0, %c0_1] : memref<16x256xf32, #tpu.memory_space<vmem>>, vector<16x256xf32>
    %c0_2 = arith.constant 0 : index
    %c0_3 = arith.constant 0 : index
    %4 = vector.load %arg3[%c0_2, %c0_3] : memref<16x256xbf16, #tpu.memory_space<vmem>>, vector<16x256xbf16>
    %c0_4 = arith.constant 0 : index
    %c0_5 = arith.constant 0 : index
    %5 = vector.load %arg4[%c0_4, %c0_5] : memref<256x256xbf16, #tpu.memory_space<vmem>>, vector<256x256xbf16>
    %cst = arith.constant dense<0.000000e+00> : vector<16x256xf32>
    %6 = tpu.matmul %4, %5, %cst {dimension_numbers = #tpu.dot_dimension_numbers<[1], [0], [0], [1], [0, 0, 1, 1], [], []>} : vector<16x256xbf16>, vector<256x256xbf16>, vector<16x256xf32> -> vector<16x256xf32>
    %7 = arith.addf %3, %6 : vector<16x256xf32>
    %c0_6 = arith.constant 0 : index
    %c0_7 = arith.constant 0 : index
    %8 = vector.load %arg7[%c0_6, %c0_7] : memref<16x256xf32, #tpu.memory_space<vmem>>, vector<16x256xf32>
    tpu.vector_store %arg7[%c0_6, %c0_7], %7 {strides = array<i32>} : memref<16x256xf32, #tpu.memory_space<vmem>>, vector<16x256xf32>,
    %c0_i32_8 = arith.constant 0 : i32
    %9 = arith.cmpi eq, %arg2, %c0_i32_8 : i32
    %10 = arith.extui %9 : i1 to i32
    %c0_i32_9 = arith.constant 0 : i32
    %11 = arith.cmpi ne, %10, %c0_i32_9 : i32
    scf.if %11 {
      %c0_10 = arith.constant 0 : index
      %c0_11 = arith.constant 0 : index
      %12 = vector.load %arg7[%c0_10, %c0_11] : memref<16x256xf32, #tpu.memory_space<vmem>>, vector<16x256xf32>
      %c0_12 = arith.constant 0 : index
      %c0_13 = arith.constant 0 : index
      %13 = vector.load %arg5[%c0_12, %c0_13] : memref<1x256xbf16, #tpu.memory_space<vmem>>, vector<1x256xbf16>
      %14 = arith.extf %13 : vector<1x256xbf16> to vector<1x256xf32>
      %15 = vector.broadcast %14 : vector<1x256xf32> to vector<16x256xf32>
      %16 = arith.addf %12, %15 : vector<16x256xf32>
      %17 = arith.truncf %16 : vector<16x256xf32> to vector<16x256xbf16>
      %c0_14 = arith.constant 0 : index
      %c0_15 = arith.constant 0 : index
      %18 = vector.load %arg6[%c0_14, %c0_15] : memref<16x256xbf16, #tpu.memory_space<vmem>>, vector<16x256xbf16>
      tpu.vector_store %arg6[%c0_14, %c0_15], %17 {strides = array<i32>} : memref<16x256xbf16, #tpu.memory_space<vmem>>, vector<16x256xbf16>,
    } else {
    }
    return
  }
  func.func @transform_0(%arg0: i32, %arg1: i32, %arg2: i32) -> (i32, i32) {
    %c0_i32 = arith.constant 0 : i32
    return %arg0, %arg2 : i32, i32
  }
  func.func @transform_1(%arg0: i32, %arg1: i32, %arg2: i32) -> (i32, i32) {
    %c0_i32 = arith.constant 0 : i32
    return %arg2, %arg1 : i32, i32
  }
  func.func @transform_2(%arg0: i32, %arg1: i32, %arg2: i32) -> (i32, i32) {
    %c0_i32 = arith.constant 0 : i32
    %c0_i32_0 = arith.constant 0 : i32
    return %c0_i32, %arg1 : i32, i32
  }
  func.func @transform_3(%arg0: i32, %arg1: i32, %arg2: i32) -> (i32, i32) {
    %c0_i32 = arith.constant 0 : i32
    return %arg0, %arg1 : i32, i32
  }
}

</mosaic_0001>

<llo_original>
// kernel: tpu_custom_call.1
$region0: #{tpu_custom_call.1}
  #allocation0 [shape = 'u32[]', space=smem, size = 0x4, offset = 0x4, fixed_abs, tag = 'smem constant byte address 0x4 - core index']
  #allocation1 [shape = 'u32[144,128]{1,0:T(1,128)}', space=vmem, size = 0x12000, scoped, tag = 'internal scratch']
  #allocation2 [shape = 'f32[16,256]{1,0:T(8,128)}', space=vmem, size = 0x4000, scoped, tag = 'scratch operand']
  %s0 = inlined_call_operand.hbm [shape: bf16[16,256], index: 0, kind: input, shape index: {}]
  %s1 = inlined_call_operand.hbm [shape: bf16[256,768], index: 1, kind: input, shape index: {}]
  %s2 = inlined_call_operand.vmem [shape: bf16[1,768], index: 2, kind: input, shape index: {}]
  %s3 = inlined_call_operand.hbm [shape: bf16[16,768], index: 3, kind: output, shape index: {}]
  %s4 = sld [smem:[#allocation0]]
  $region61: #{tpu_custom_call.1} parent=0
    _
  %s6 = ssub.s32 1, %s4
  %s7 = scalar_select 0, %s6, %s4
  $region1: #{tpu_custom_call.1} parent=0
    #allocation3 [shape = 'u8[8192]{0}', space=vmem, size = 0x2000, scoped, tag = 'input window, operand 0, single buffered']
    #allocation4 [shape = 's32[2]{0}', space=sflag, size = 0x8, scoped, tag = 'scoped memory for tpu_custom_call.1']
    #allocation5 [shape = 's32[2]{0}', space=sflag, size = 0x8, scoped, tag = 'scoped memory for tpu_custom_call.1']
    #allocation6 [shape = 'u8[262144]{0}', space=vmem, size = 0x40000, scoped, tag = 'input window, operand 1']
    #allocation7 [shape = 's32[2]{0}', space=sflag, size = 0x8, scoped, tag = 'scoped memory for tpu_custom_call.1']
    #allocation8 [shape = 'u8[16384]{0}', space=vmem, size = 0x4000, scoped, tag = 'output window, operand 0']
    %8 = vsyncpa [#allocation4], 0
    %9 = vsyncpa [#allocation7], 0
    %s10 = scalar_lea.sflag [#allocation7], 1
    %11 = vsyncpa %s10, 0
    %12 = vsyncpa [#allocation5], 0
    %s13 = scalar_lea.sflag [#allocation5], 1
    %14 = vsyncpa %s13, 0
    loop: start=0, step=1, limit=5
    $region2: #{tpu_custom_call.1} parent=1 // loop_pre_header
      _
    $region3: #{tpu_custom_call.1} parent=1 // loop_header
      %s16 = sphi 0, %s20
      %p17 = scmp.ge.s32.totalorder %s16, 5
      %s23 = sphi 0, %s42
      %s24 = sphi 0, %s38
      %s25 = sphi 0, %s34
      %s26 = sphi 0, %s23
      %s27 = sphi 0, %s24
      %s28 = sphi 0, %s25
      %s29 = sphi 0, %s26
      %s30 = sphi 0, %s27
      %s31 = sphi 0, %s28
      %s47 = sphi 0, %s49
      %s50 = sphi 0, %s47
      %s51 = sphi 0, %s50
      %s67 = sphi 0, %s51
      %s75 = sphi 0, %s77
      %s78 = sphi 0, %s75
      %s79 = sphi 0, %s78
      %s95 = sphi 0, %s79
      %s101 = sphi 0, %s103
      %s104 = sphi 0, %s101
      %s105 = sphi 0, %s104
      %s121 = sphi 0, %s105
      %s129 = sphi 0, %s131
      %s132 = sphi 0, %s129
      %s133 = sphi 0, %s132
      %s149 = sphi 0, %s133
    $region4: #{tpu_custom_call.1} parent=1 // loop_header_branch
      %19 = sbr.rel (%p17) target = $region8
    $region5: #{tpu_custom_call.1} parent=1 // loop_body
      %s21 = ssub.s32 %s16, 1
      %s22 = ssub.s32 %s16, 2
      %s32 = sadd.s32 1, %s25
      %p33 = scmp.ge.s32.totalorder %s32, 1
      %s34 = scalar_select %p33, 0, %s32
      %s35 = sadd.s32 1, %s24
      %s36 = scalar_select %p33, %s35, %s24
      %p37 = scmp.ge.s32.totalorder %s36, 3
      %s38 = scalar_select %p37, 0, %s36
      %s39 = sadd.s32 1, %s23
      %s40 = scalar_select %p37, %s39, %s23
      %p41 = scmp.ge.s32.totalorder %s40, 1
      %s42 = scalar_select %p41, 0, %s40
      %s43 = ssub.s32 %s23, %s42
      %s44 = ssub.s32 %s25, %s34
      %s45 = sor.u32 %s43, %s44
      %p46 = scmp.eq.s32.totalorder %s45, 0
      %s48 = sadd.s32 %s47, 1
      %s49 = scalar_select %p46, %s47, %s48
      %p52 = pneg %p46
      %p53 = scmp.eq.s32.totalorder %s16, 2
      %p54 = por %p52, %p53
      %p55 = scmp.ne.s32.totalorder %s47, %s50
      %p56 = scmp.eq.s32.totalorder %s16, 0
      %p57 = por %p55, %p56
      %p58 = scmp.ne.s32.totalorder %s47, %s50
      %p59 = scmp.eq.s32.totalorder %s21, 2
      %p60 = por %p58, %p59
      %p61 = scmp.ne.s32.totalorder %s50, %s51
      %p62 = scmp.eq.s32.totalorder %s21, 0
      %p63 = por %p61, %p62
      %p64 = scmp.ne.s32.totalorder %s50, %s51
      %p65 = scmp.eq.s32.totalorder %s22, 2
      %p66 = por %p64, %p65
      %p68 = scmp.ne.s32.totalorder %s51, %s67
      %p69 = scmp.eq.s32.totalorder %s22, 0
      %p70 = por %p68, %p69
      %s71 = ssub.s32 %s25, %s34
      %s72 = ssub.s32 %s24, %s38
      %s73 = sor.u32 %s71, %s72
      %p74 = scmp.eq.s32.totalorder %s73, 0
      %s76 = sadd.s32 %s75, 1
      %s77 = scalar_select %p74, %s75, %s76
      %p80 = pneg %p74
      %p81 = scmp.eq.s32.totalorder %s16, 2
      %p82 = por %p80, %p81
      %p83 = scmp.ne.s32.totalorder %s75, %s78
      %p84 = scmp.eq.s32.totalorder %s16, 0
      %p85 = por %p83, %p84
      %p86 = scmp.ne.s32.totalorder %s75, %s78
      %p87 = scmp.eq.s32.totalorder %s21, 2
      %p88 = por %p86, %p87
      %p89 = scmp.ne.s32.totalorder %s78, %s79
      %p90 = scmp.eq.s32.totalorder %s21, 0
      %p91 = por %p89, %p90
      %p92 = scmp.ne.s32.totalorder %s78, %s79
      %p93 = scmp.eq.s32.totalorder %s22, 2
      %p94 = por %p92, %p93
      %p96 = scmp.ne.s32.totalorder %s79, %s95
      %p97 = scmp.eq.s32.totalorder %s22, 0
      %p98 = por %p96, %p97
      %s99 = ssub.s32 %s24, %s38
      %p100 = scmp.eq.s32.totalorder %s99, 0
      %s102 = sadd.s32 %s101, 1
      %s103 = scalar_select %p100, %s101, %s102
      %p106 = pneg %p100
      %p107 = scmp.eq.s32.totalorder %s16, 2
      %p108 = por %p106, %p107
      %p109 = scmp.ne.s32.totalorder %s101, %s104
      %p110 = scmp.eq.s32.totalorder %s16, 0
      %p111 = por %p109, %p110
      %p112 = scmp.ne.s32.totalorder %s101, %s104
      %p113 = scmp.eq.s32.totalorder %s21, 2
      %p114 = por %p112, %p113
      %p115 = scmp.ne.s32.totalorder %s104, %s105
      %p116 = scmp.eq.s32.totalorder %s21, 0
      %p117 = por %p115, %p116
      %p118 = scmp.ne.s32.totalorder %s104, %s105
      %p119 = scmp.eq.s32.totalorder %s22, 2
      %p120 = por %p118, %p119
      %p122 = scmp.ne.s32.totalorder %s105, %s121
      %p123 = scmp.eq.s32.totalorder %s22, 0
      %p124 = por %p122, %p123
      %s125 = ssub.s32 %s23, %s42
      %s126 = ssub.s32 %s24, %s38
      %s127 = sor.u32 %s125, %s126
      %p128 = scmp.eq.s32.totalorder %s127, 0
      %s130 = sadd.s32 %s129, 1
      %s131 = scalar_select %p128, %s129, %s130
      %p134 = pneg %p128
      %p135 = scmp.eq.s32.totalorder %s16, 2
      %p136 = por %p134, %p135
      %p137 = scmp.ne.s32.totalorder %s129, %s132
      %p138 = scmp.eq.s32.totalorder %s16, 0
      %p139 = por %p137, %p138
      %p140 = scmp.ne.s32.totalorder %s129, %s132
      %p141 = scmp.eq.s32.totalorder %s21, 2
      %p142 = por %p140, %p141
      %p143 = scmp.ne.s32.totalorder %s132, %s133
      %p144 = scmp.eq.s32.totalorder %s21, 0
      %p145 = por %p143, %p144
      %p146 = scmp.ne.s32.totalorder %s132, %s133
      %p147 = scmp.eq.s32.totalorder %s22, 2
      %p148 = por %p146, %p147
      %p150 = scmp.ne.s32.totalorder %s133, %s149
      %p151 = scmp.eq.s32.totalorder %s22, 0
      %p152 = por %p150, %p151
      %p153 = scmp.le.s32.totalorder 1, %s16
      %p154 = scmp.lt.s32.totalorder %s16, 4
      %p155 = pnand %p153, %p154
      %p156 = pneg %p155
      // Predicated region
      $region9: #{tpu_custom_call.1} parent=5 // pred_check
        _
      $region10: #{tpu_custom_call.1} parent=5 // pred_check_branch
        %158 = sbr.rel (%p155) target = $region12
      $region11: #{tpu_custom_call.1} parent=5 // pred_region
        %s159 = ssub.s32 %s16, 1
        // Predicated region
        $region13: #{tpu_custom_call.1} parent=11 // pred_check
          %p160 = pneg %p63
        $region14: #{tpu_custom_call.1} parent=11 // pred_check_branch
          %162 = sbr.rel (%p160) target = $region16
        $region15: #{tpu_custom_call.1} parent=11 // pred_region
          %s163 = smul.u32 2, %s26
          %s164 = smul.u32 2, %s28
          %s166 = ssub.s32 256, 256
          %167 = vsyncadd [#allocation4], %s166
          %s168 = smul.addr %s163, 2
          %s169 = sadd.s32 %s164, %s168
          %s170 = smul.addr %s169, 64
          %s171 = scalar_lea.hbm %s0, %s170
          %s172 = sshll.u32 [#allocation3], 4
          %s173 = int_to_ptr.vmem [resolvable:$true] %s172
          %178 = dma.hbm_to_vmem [thread:$0]  %s171, 256, %s173, [#allocation4], 128, 128, 8
        $region16: #{tpu_custom_call.1} parent=11 // pred_fallthru
          _
      $region12: #{tpu_custom_call.1} parent=5 // pred_fallthru
        _
      %p179 = scmp.lt.s32.totalorder %s16, 3
      // Predicated region
      $region17: #{tpu_custom_call.1} parent=5 // pred_check
        %p180 = pneg %p179
      $region18: #{tpu_custom_call.1} parent=5 // pred_check_branch
        %182 = sbr.rel (%p180) target = $region20
      $region19: #{tpu_custom_call.1} parent=5 // pred_region
        // Predicated region
        $region21: #{tpu_custom_call.1} parent=19 // pred_check
          %p183 = pneg %p85
        $region22: #{tpu_custom_call.1} parent=19 // pred_check_branch
          %185 = sbr.rel (%p183) target = $region24
        $region23: #{tpu_custom_call.1} parent=19 // pred_region
          %s186 = sand.u32 %s75, 1
          %s187 = scalar_lea.sflag [#allocation7], %s186
          %s188 = sand.u32 %s75, 1
          %s189 = smul.addr %s188, 256
          %s190 = scalar_lea.vmem [#allocation6], %s189
          %s191 = smul.u32 32, %s25
          %s192 = smul.u32 2, %s24
          %s194 = ssub.s32 4096, 4096
          %195 = vsyncadd %s187, %s194
          %s196 = smul.addr %s191, 6
          %s197 = sadd.s32 %s192, %s196
          %s198 = smul.addr %s197, 64
          %s199 = scalar_lea.hbm %s1, %s198
          %s200 = sshll.u32 %s190, 4
          %s201 = int_to_ptr.vmem [resolvable:$true] %s200
          %206 = dma.hbm_to_vmem [thread:$0]  %s199, 4096, %s201, %s187, 384, 128, 8
        $region24: #{tpu_custom_call.1} parent=19 // pred_fallthru
          _
        // Predicated region
        $region25: #{tpu_custom_call.1} parent=19 // pred_check
          %p207 = pneg %p111
        $region26: #{tpu_custom_call.1} parent=19 // pred_check_branch
          %209 = sbr.rel (%p207) target = $region28
        $region27: #{tpu_custom_call.1} parent=19 // pred_region
          %s210 = smul.u32 2, %s24
          %p211 = scmp.lt.s32.totalorder %s210, 5
          %s212 = scalar_select %p211, %s210, 5
          %s213 = scalar_lea.vmem %s2, %s212
          %s214 = smul.u32 2, %s24
        $region28: #{tpu_custom_call.1} parent=19 // pred_fallthru
          _
      $region20: #{tpu_custom_call.1} parent=5 // pred_fallthru
        _
      %p215 = scmp.le.s32.totalorder 1, %s16
      %p216 = scmp.lt.s32.totalorder %s16, 4
      %p217 = pnand %p215, %p216
      %p218 = pneg %p217
      // Predicated region
      $region29: #{tpu_custom_call.1} parent=5 // pred_check
        _
      $region30: #{tpu_custom_call.1} parent=5 // pred_check_branch
        %220 = sbr.rel (%p217) target = $region32
      $region31: #{tpu_custom_call.1} parent=5 // pred_region
        %s221 = ssub.s32 %s16, 1
        // Predicated region
        $region33: #{tpu_custom_call.1} parent=31 // pred_check
          %p222 = pneg %p63
        $region34: #{tpu_custom_call.1} parent=31 // pred_check_branch
          %224 = sbr.rel (%p222) target = $region36
        $region35: #{tpu_custom_call.1} parent=31 // pred_region
          %225 = dma.done [#allocation4], 256
        $region36: #{tpu_custom_call.1} parent=31 // pred_fallthru
          _
        %s226 = sand.u32 %s78, 1
        %s227 = scalar_lea.sflag [#allocation7], %s226
        %s228 = sand.u32 %s78, 1
        %s229 = smul.addr %s228, 256
        %s230 = scalar_lea.vmem [#allocation6], %s229
        // Predicated region
        $region37: #{tpu_custom_call.1} parent=31 // pred_check
          %p231 = pneg %p91
        $region38: #{tpu_custom_call.1} parent=31 // pred_check_branch
          %233 = sbr.rel (%p231) target = $region40
        $region39: #{tpu_custom_call.1} parent=31 // pred_region
          %234 = dma.done %s227, 4096
        $region40: #{tpu_custom_call.1} parent=31 // pred_fallthru
          _
        %p235 = pneg %p63
        %p236 = pneg %p60
        %s237 = sand.u32 %s78, 1
        %s238 = scalar_lea.sflag [#allocation7], %s237
        %s239 = sand.u32 %s78, 1
        %s240 = smul.addr %s239, 256
        %s241 = scalar_lea.vmem [#allocation6], %s240
        %p242 = pneg %p91
        %p243 = pneg %p88
        %s244 = smul.u32 2, %s27
        %p245 = scmp.lt.s32.totalorder %s244, 5
        %s246 = scalar_select %p245, %s244, 5
        %s247 = scalar_lea.vmem %s2, %s246
        %p248 = pneg %p117
        %p249 = pneg %p114
        %p250 = pneg %p145
        %p251 = pneg %p142
        %s252 = sand.u32 %s132, 1
        %s253 = scalar_lea.sflag [#allocation5], %s252
        %s254 = sand.u32 %s132, 1
        %s255 = smul.addr %s254, 16
        %s256 = scalar_lea.vmem [#allocation8], %s255
        %s257 = smul.u32 2, %s26
        %s258 = smul.u32 2, %s28
        %s259 = smul.u32 32, %s28
        %s260 = smul.u32 2, %s27
        %s261 = smul.u32 2, %s27
        %p262 = scmp.lt.s32.totalorder %s261, 5
        %s263 = scalar_select %p262, %s261, 5
        %s264 = scalar_lea.vmem %s2, %s263
        %s265 = smul.u32 2, %s27
        %s266 = smul.u32 2, %s26
        %s267 = smul.u32 2, %s27
        %p268 = scmp.eq.s32.totalorder %s28, 0
        // Predicated region
        $region41: #{tpu_custom_call.1} parent=31 // pred_check
          %p269 = pneg %p268
        $region42: #{tpu_custom_call.1} parent=31 // pred_check_branch
          %271 = sbr.rel (%p269) target = $region44
        $region43: #{tpu_custom_call.1} parent=31 // pred_region
          %272 = vst [vmem:[#allocation2] sm:$0xff] 0.0
          %273 = vst [vmem:[#allocation2 + $0x8] sm:$0xff] 0.0
          %274 = vst [vmem:[#allocation2 + $0x10] sm:$0xff] 0.0
          %275 = vst [vmem:[#allocation2 + $0x18] sm:$0xff] 0.0
        $region44: #{tpu_custom_call.1} parent=31 // pred_fallthru
          _
        %v276 = vld [vmem:[#allocation2] sm:$0xff]
        %v277 = vld [vmem:[#allocation2 + $0x8] sm:$0xff]
        %v278 = vld [vmem:[#allocation2 + $0x10] sm:$0xff]
        %v279 = vld [vmem:[#allocation2 + $0x18] sm:$0xff]
        %v280 = vld [vmem:[#allocation3] sm:$0xff]
        %v281 = vld [vmem:[#allocation3 + $0x8] sm:$0xff]
        %v282 = vld [vmem:[%s230] sm:$0xff]
        %v283 = vld [vmem:[%s230 + $0x8] sm:$0xff]
        %v284 = vld [vmem:[%s230 + $0x10] sm:$0xff]
        %v285 = vld [vmem:[%s230 + $0x18] sm:$0xff]
        %v286 = vld [vmem:[%s230 + $0x20] sm:$0xff]
        %v287 = vld [vmem:[%s230 + $0x28] sm:$0xff]
        %v288 = vld [vmem:[%s230 + $0x30] sm:$0xff]
        %v289 = vld [vmem:[%s230 + $0x38] sm:$0xff]
        %v290 = vld [vmem:[%s230 + $0x40] sm:$0xff]
        %v291 = vld [vmem:[%s230 + $0x48] sm:$0xff]
        %v292 = vld [vmem:[%s230 + $0x50] sm:$0xff]
        %v293 = vld [vmem:[%s230 + $0x58] sm:$0xff]
        %v294 = vld [vmem:[%s230 + $0x60] sm:$0xff]
        %v295 = vld [vmem:[%s230 + $0x68] sm:$0xff]
        %v296 = vld [vmem:[%s230 + $0x70] sm:$0xff]
        %v297 = vld [vmem:[%s230 + $0x78] sm:$0xff]
        %v298 = vld [vmem:[%s230 + $0x80] sm:$0xff]
        %v299 = vld [vmem:[%s230 + $0x88] sm:$0xff]
        %v300 = vld [vmem:[%s230 + $0x90] sm:$0xff]
        %v301 = vld [vmem:[%s230 + $0x98] sm:$0xff]
        %v302 = vld [vmem:[%s230 + $0xa0] sm:$0xff]
        %v303 = vld [vmem:[%s230 + $0xa8] sm:$0xff]
        %v304 = vld [vmem:[%s230 + $0xb0] sm:$0xff]
        %v305 = vld [vmem:[%s230 + $0xb8] sm:$0xff]
        %v306 = vld [vmem:[%s230 + $0xc0] sm:$0xff]
        %v307 = vld [vmem:[%s230 + $0xc8] sm:$0xff]
        %v308 = vld [vmem:[%s230 + $0xd0] sm:$0xff]
        %v309 = vld [vmem:[%s230 + $0xd8] sm:$0xff]
        %v310 = vld [vmem:[%s230 + $0xe0] sm:$0xff]
        %v311 = vld [vmem:[%s230 + $0xe8] sm:$0xff]
        %v312 = vld [vmem:[%s230 + $0xf0] sm:$0xff]
        %v313 = vld [vmem:[%s230 + $0xf8] sm:$0xff]
        %v316 = vunpack.c.l.b16 %v280
        %v317 = vunpack.c.h.b16 %v280
        %v318 = vunpack.c.l.b16 %v281
        %v319 = vunpack.c.h.b16 %v281
        %v320 = vpack.c.b16 %v318, %v316
        %v321 = vpack.c.b16 %v319, %v317
        %v356 = vunpack.c.l.b16 %v282
        %v357 = vunpack.c.h.b16 %v282
        %v358 = vunpack.c.l.b16 %v283
        %v359 = vunpack.c.h.b16 %v283
        %v360 = vunpack.c.l.b16 %v284
        %v361 = vunpack.c.h.b16 %v284
        %v362 = vunpack.c.l.b16 %v285
        %v363 = vunpack.c.h.b16 %v285
        %v364 = vunpack.c.l.b16 %v286
        %v365 = vunpack.c.h.b16 %v286
        %v366 = vunpack.c.l.b16 %v287
        %v367 = vunpack.c.h.b16 %v287
        %v368 = vunpack.c.l.b16 %v288
        %v369 = vunpack.c.h.b16 %v288
        %v370 = vunpack.c.l.b16 %v289
        %v371 = vunpack.c.h.b16 %v289
        %v372 = vunpack.c.l.b16 %v290
        %v373 = vunpack.c.h.b16 %v290
        %v374 = vunpack.c.l.b16 %v291
        %v375 = vunpack.c.h.b16 %v291
        %v376 = vunpack.c.l.b16 %v292
        %v377 = vunpack.c.h.b16 %v292
        %v378 = vunpack.c.l.b16 %v293
        %v379 = vunpack.c.h.b16 %v293
        %v380 = vunpack.c.l.b16 %v294
        %v381 = vunpack.c.h.b16 %v294
        %v382 = vunpack.c.l.b16 %v295
        %v383 = vunpack.c.h.b16 %v295
        %v384 = vunpack.c.l.b16 %v296
        %v385 = vunpack.c.h.b16 %v296
        %v386 = vunpack.c.l.b16 %v297
        %v387 = vunpack.c.h.b16 %v297
        %v388 = vunpack.c.l.b16 %v298
        %v389 = vunpack.c.h.b16 %v298
        %v390 = vunpack.c.l.b16 %v299
        %v391 = vunpack.c.h.b16 %v299
        %v392 = vunpack.c.l.b16 %v300
        %v393 = vunpack.c.h.b16 %v300
        %v394 = vunpack.c.l.b16 %v301
        %v395 = vunpack.c.h.b16 %v301
        %v396 = vunpack.c.l.b16 %v302
        %v397 = vunpack.c.h.b16 %v302
        %v398 = vunpack.c.l.b16 %v303
        %v399 = vunpack.c.h.b16 %v303
        %v400 = vunpack.c.l.b16 %v304
        %v401 = vunpack.c.h.b16 %v304
        %v402 = vunpack.c.l.b16 %v305
        %v403 = vunpack.c.h.b16 %v305
        %v404 = vunpack.c.l.b16 %v306
        %v405 = vunpack.c.h.b16 %v306
        %v406 = vunpack.c.l.b16 %v307
        %v407 = vunpack.c.h.b16 %v307
        %v408 = vunpack.c.l.b16 %v308
        %v409 = vunpack.c.h.b16 %v308
        %v410 = vunpack.c.l.b16 %v309
        %v411 = vunpack.c.h.b16 %v309
        %v412 = vunpack.c.l.b16 %v310
        %v413 = vunpack.c.h.b16 %v310
        %v414 = vunpack.c.l.b16 %v311
        %v415 = vunpack.c.h.b16 %v311
        %v416 = vunpack.c.l.b16 %v312
        %v417 = vunpack.c.h.b16 %v312
        %v418 = vunpack.c.l.b16 %v313
        %v419 = vunpack.c.h.b16 %v313
        %v420 = vpack.c.b16 %v358, %v356
        %v421 = vpack.c.b16 %v359, %v357
        %v422 = vpack.c.b16 %v362, %v360
        %v423 = vpack.c.b16 %v363, %v361
        %v424 = vpack.c.b16 %v366, %v364
        %v425 = vpack.c.b16 %v367, %v365
        %v426 = vpack.c.b16 %v370, %v368
        %v427 = vpack.c.b16 %v371, %v369
        %v428 = vpack.c.b16 %v374, %v372
        %v429 = vpack.c.b16 %v375, %v373
        %v430 = vpack.c.b16 %v378, %v376
        %v431 = vpack.c.b16 %v379, %v377
        %v432 = vpack.c.b16 %v382, %v380
        %v433 = vpack.c.b16 %v383, %v381
        %v434 = vpack.c.b16 %v386, %v384
        %v435 = vpack.c.b16 %v387, %v385
        %v436 = vpack.c.b16 %v390, %v388
        %v437 = vpack.c.b16 %v391, %v389
        %v438 = vpack.c.b16 %v394, %v392
        %v439 = vpack.c.b16 %v395, %v393
        %v440 = vpack.c.b16 %v398, %v396
        %v441 = vpack.c.b16 %v399, %v397
        %v442 = vpack.c.b16 %v402, %v400
        %v443 = vpack.c.b16 %v403, %v401
        %v444 = vpack.c.b16 %v406, %v404
        %v445 = vpack.c.b16 %v407, %v405
        %v446 = vpack.c.b16 %v410, %v408
        %v447 = vpack.c.b16 %v411, %v409
        %v448 = vpack.c.b16 %v414, %v412
        %v449 = vpack.c.b16 %v415, %v413
        %v450 = vpack.c.b16 %v418, %v416
        %v451 = vpack.c.b16 %v419, %v417
        %484 = vmatprep.subr.bf16.mxu0 %v421
        %485 = vmatpush1.bf16.msra.mxu0 %v420
        %486 = vmatprep.subr.bf16.mxu0 %v423
        %487 = vmatpush1.bf16.msra.mxu0 %v422
        %488 = vmatprep.subr.bf16.mxu0 %v425
        %489 = vmatpush1.bf16.msra.mxu0 %v424
        %490 = vmatprep.subr.bf16.mxu0 %v427
        %491 = vmatpush1.bf16.msra.mxu0 %v426
        %492 = vmatprep.subr.bf16.mxu0 %v429
        %493 = vmatpush1.bf16.msra.mxu0 %v428
        %494 = vmatprep.subr.bf16.mxu0 %v431
        %495 = vmatpush1.bf16.msra.mxu0 %v430
        %496 = vmatprep.subr.bf16.mxu0 %v433
        %497 = vmatpush1.bf16.msra.mxu0 %v432
        %498 = vmatprep.subr.bf16.mxu0 %v435
        %499 = vmatpush1.bf16.msra.mxu0 %v434
        %500 = vmatprep.subr.bf16.mxu0 %v437
        %501 = vmatpush1.bf16.msra.mxu0 %v436
        %502 = vmatprep.subr.bf16.mxu0 %v439
        %503 = vmatpush1.bf16.msra.mxu0 %v438
        %504 = vmatprep.subr.bf16.mxu0 %v441
        %505 = vmatpush1.bf16.msra.mxu0 %v440
        %506 = vmatprep.subr.bf16.mxu0 %v443
        %507 = vmatpush1.bf16.msra.mxu0 %v442
        %508 = vmatprep.subr.bf16.mxu0 %v445
        %509 = vmatpush1.bf16.msra.mxu0 %v444
        %510 = vmatprep.subr.bf16.mxu0 %v447
        %511 = vmatpush1.bf16.msra.mxu0 %v446
        %512 = vmatprep.subr.bf16.mxu0 %v449
        %513 = vmatpush1.bf16.msra.mxu0 %v448
        %514 = vmatprep.subr.bf16.mxu0 %v451
        %515 = vmatpush1.bf16.msra.mxu0 %v450
        %516 = vmatprep.mubr.bf16.mxu0 %v321
        %517 = vmatmul.mubr.bf16.gmra.mrb[0].mxu0 %v320
        %v518 = vpop.f32.mrb[0].mxu0
        %v519 = vadd.f32 0.0, %v518
        %v520 = vpop.f32.mrb[0].mxu0
        %v521 = vadd.f32 0.0, %v520
        %v522 = vpop.f32.mrb[0].mxu0
        %v523 = vadd.f32 0.0, %v522
        %v524 = vpop.f32.mrb[0].mxu0
        %v525 = vadd.f32 0.0, %v524
        %526 = vdwg.mxu0
        %v527 = vadd.f32 %v276, %v519
        %v528 = vadd.f32 %v277, %v521
        %v529 = vadd.f32 %v278, %v523
        %v530 = vadd.f32 %v279, %v525
        %531 = vst [vmem:[#allocation2] sm:$0xff] %v527
        %532 = vst [vmem:[#allocation2 + $0x8] sm:$0xff] %v528
        %533 = vst [vmem:[#allocation2 + $0x10] sm:$0xff] %v529
        %534 = vst [vmem:[#allocation2 + $0x18] sm:$0xff] %v530
        // Predicated region
        $region45: #{tpu_custom_call.1} parent=31 // pred_check
          %p535 = pneg %p268
        $region46: #{tpu_custom_call.1} parent=31 // pred_check_branch
          %537 = sbr.rel (%p535) target = $region48
        $region47: #{tpu_custom_call.1} parent=31 // pred_region
          %v538 = vld [vmem:[#allocation2] sm:$0xff]
          %v539 = vld [vmem:[#allocation2 + $0x8] sm:$0xff]
          %v540 = vld [vmem:[#allocation2 + $0x10] sm:$0xff]
          %v541 = vld [vmem:[#allocation2 + $0x18] sm:$0xff]
          %v542 = vld [vmem:[%s264] sm:$0x3]
          %v543 = vunpack.c.l.bf16 %v542
          %v545 = vlaneseq
          %v546 = vshrl.u32 %v545, 7
          %v547 = vsub.s32 0, %v546
          %v548 = vrot.slane %v543, %v547
          %v549 = vlaneseq
          %v550 = vshrl.u32 %v549, 7
          %v551 = vsub.s32 2, %v550
          %v552 = vrot.slane %v543, %v551
          %v555 = vlaneseq
          %v556 = vshrl.u32 %v555, 7
          %v557 = vsub.s32 0, %v556
          %v558 = vrot.slane %v548, %v557
          %v559 = vlaneseq
          %v560 = vshrl.u32 %v559, 7
          %v561 = vsub.s32 0, %v560
          %v562 = vrot.slane %v552, %v561
          %v563 = vadd.f32 %v538, %v558
          %v564 = vadd.f32 %v539, %v562
          %v565 = vadd.f32 %v540, %v558
          %v566 = vadd.f32 %v541, %v562
          %v567 = vpack.c.bf16 %v565, %v563
          %v568 = vpack.c.bf16 %v566, %v564
          %v571 = vunpack.c.l.b16 %v567
          %v572 = vunpack.c.l.b16 %v568
          %v573 = vunpack.c.h.b16 %v567
          %v574 = vunpack.c.h.b16 %v568
          %v575 = vpack.c.b16 %v572, %v571
          %v576 = vpack.c.b16 %v574, %v573
          %579 = vst [vmem:[%s256] sm:$0xff] %v575
          %580 = vst [vmem:[%s256 + $0x8] sm:$0xff] %v576
        $region48: #{tpu_custom_call.1} parent=31 // pred_fallthru
          _
        %s581 = sand.u32 %s132, 1
        %s582 = scalar_lea.sflag [#allocation5], %s581
        %s583 = sand.u32 %s132, 1
        %s584 = smul.addr %s583, 16
        %s585 = scalar_lea.vmem [#allocation8], %s584
        // Predicated region
        $region49: #{tpu_custom_call.1} parent=31 // pred_check
          %p586 = pneg %p142
        $region50: #{tpu_custom_call.1} parent=31 // pred_check_branch
          %588 = sbr.rel (%p586) target = $region52
        $region51: #{tpu_custom_call.1} parent=31 // pred_region
          %s589 = smul.u32 2, %s26
          %s590 = smul.u32 2, %s27
          %s592 = ssub.s32 256, 256
          %593 = vsyncadd %s582, %s592
          %s594 = smul.addr %s589, 6
          %s595 = sadd.s32 %s590, %s594
          %s596 = smul.addr %s595, 64
          %s597 = scalar_lea.hbm %s3, %s596
          %s598 = sshll.u32 %s585, 4
          %s599 = int_to_ptr.vmem [resolvable:$true] %s598
          %604 = dma.vmem_to_hbm [thread:$0]  %s599, 256, %s597, %s582, 128, 384, 8
        $region52: #{tpu_custom_call.1} parent=31 // pred_fallthru
          _
      $region32: #{tpu_custom_call.1} parent=5 // pred_fallthru
        _
      %p605 = scmp.le.s32.totalorder 2, %s16
      // Predicated region
      $region53: #{tpu_custom_call.1} parent=5 // pred_check
        %p606 = pneg %p605
      $region54: #{tpu_custom_call.1} parent=5 // pred_check_branch
        %608 = sbr.rel (%p606) target = $region56
      $region55: #{tpu_custom_call.1} parent=5 // pred_region
        %s609 = ssub.s32 %s16, 2
        // Predicated region
        $region57: #{tpu_custom_call.1} parent=55 // pred_check
          %p610 = pneg %p148
        $region58: #{tpu_custom_call.1} parent=55 // pred_check_branch
          %612 = sbr.rel (%p610) target = $region60
        $region59: #{tpu_custom_call.1} parent=55 // pred_region
          %s613 = sand.u32 %s133, 1
          %s614 = scalar_lea.sflag [#allocation5], %s613
          %s615 = sand.u32 %s133, 1
          %s616 = smul.addr %s615, 16
          %s617 = scalar_lea.vmem [#allocation8], %s616
          %618 = dma.done %s614, 256
        $region60: #{tpu_custom_call.1} parent=55 // pred_fallthru
          _
      $region56: #{tpu_custom_call.1} parent=5 // pred_fallthru
        _
    $region6: #{tpu_custom_call.1} parent=1 // loop_footer
      %s20 = sadd.s32 1, %s16
    $region7: #{tpu_custom_call.1} parent=1 // loop_footer_branch
      %15 = sbr.rel target = $region3
    $region8: #{tpu_custom_call.1} parent=1 // loop_exit
      _
    %619 = vsyncpa [#allocation4], 1
    %s620 = scalar_lea.sflag [#allocation4], 1
    %621 = vsyncpa %s620, 1
    %622 = vsyncpa [#allocation7], 1
    %s623 = scalar_lea.sflag [#allocation7], 1
    %624 = vsyncpa %s623, 1
    %625 = vsyncpa [#allocation5], 1
    %s626 = scalar_lea.sflag [#allocation5], 1
    %627 = vsyncpa %s626, 1

</llo_original>
